<compile_context>
chip_gen: v7x
topology: tpu7x:2x2x1
jax: 0.10.0
libtpu: 0.0.40
codegen_flags: <defaults>
</compile_context>

<pallas_src>
import functools

import jax
import jax.numpy as jnp
from jax.experimental import pallas as pl
from jax.experimental.pallas import tpu as pltpu


@functools.cache
def _roll_is_np_convention() -> bool:
    """True iff pltpu.roll(x, k, ax)[..., i] == x[..., (i - k) % n] (np.roll)."""
    def probe(x_ref, o_ref):
        o_ref[...] = pltpu.roll(x_ref[...], 1, 1)

    x = jax.lax.broadcasted_iota(jnp.int32, (8, 128), 1)
    y = pl.pallas_call(
        probe,
        out_shape=jax.ShapeDtypeStruct((8, 128), jnp.int32),
        grid=(1,),
        in_specs=[pl.BlockSpec((8, 128), lambda i: (0, 0))],
        out_specs=pl.BlockSpec((8, 128), lambda i: (0, 0)),
    )(x)
    return int(y[0, 1]) == 0


def _resblock_kernel(x_ref, w1_ref, b1_ref, w2_ref, b2_ref, out_ref, *,
                     N, C, H, W, K, P, roll_np):
    R = N * C
    HW = H * W

    # relu(img), computed once, reused by conv1 and the residual add.
    x_relu = jnp.maximum(x_ref[...], 0.0).astype(jnp.float32)        # (R, HW)

    # ---- base boundary masks (built once, shared by both convs) -----------
    p = jax.lax.broadcasted_iota(jnp.int32, (R, HW), 1)               # flat pos
    q = p % W                                                         # column
    row_mask = {dh: jnp.logical_and(p + dh * W >= 0, p + dh * W < HW)
                for dh in range(-P, K - P) if dh != 0}
    col_mask = {dw: jnp.logical_and(q + dw >= 0, q + dw < W)
                for dw in range(-P, K - P) if dw != 0}

    def lane_shift(v, s):
        # out[:, p] = v[:, (p + s) % HW]; out-of-image sources masked by caller.
        sh = (-s) % HW if roll_np else s % HW
        return pltpu.roll(v, sh, 1)                                   # XLU

    def conv(v, w_ref, b_ref):
        # v     : (R, HW) f32, rows r = c*N + n (channel-major, batch-minor).
        # w_ref : (K*K*C, R, 1), flat index tap*C + d, tap = kh*K + kw, with
        #         w_ref[tap*C + d, c*N + n, 0] = w[(c - d) % C, c, kh, kw].
        # b_ref : (R, 1) with b_ref[c_out*N + n, 0] = b[c_out].
        part = [None] * C            # per-channel-offset partial sums
        for kh in range(K):
            for kw in range(K):
                dh, dw = kh - P, kw - P
                s = dh * W + dw
                tap = kh * K + kw
                y = v if s == 0 else lane_shift(v, s)
                m = row_mask.get(dh)
                if dw != 0:
                    m = col_mask[dw] if m is None else jnp.logical_and(m, col_mask[dw])
                if m is not None:
                    y = jnp.where(m, y, 0.0)
                for d in range(C):
                    t = w_ref[tap * C + d] * y                       # (R,1)*(R,HW)
                    part[d] = t if part[d] is None else part[d] + t
        # acc[r] = bias[r] + sum_d part[d][(r + d*N) % R]
        acc = jnp.broadcast_to(b_ref[...], (R, HW)).astype(jnp.float32) + part[0]
        for d in range(1, C):
            k = d * N
            # Static sublane rotation (3 per conv); slice+concat keeps lowering
            # trivially safe and its cost is negligible at this count.
            acc = acc + jnp.concatenate([part[d][k:], part[d][:k]], axis=0)
        return acc

    h1 = jnp.maximum(conv(x_relu, w1_ref, b1_ref), 0.0)   # ReLU(conv1(x) + b1)
    out = x_relu + conv(h1, w2_ref, b2_ref)               # residual + conv2 + b2
    out_ref[...] = out.astype(out_ref.dtype)


def _prep_weight(w, N, C, K):
    """(C_out, C_in, K, K) OIHW -> (K*K*C, N*C, 1).

    Entry [tap*C + d, c*N + n, 0] = w[(c - d) % C, c, kh, kw] with tap = kh*K+kw,
    i.e. the weight that multiplies input-channel-c data contributing to output
    channel (c - d) mod C (the per-d partial sums are sublane-rotated by d*N
    inside the kernel before being summed).
    """
    ci = jnp.arange(C)
    sel = jnp.stack([w[(ci - d) % C, ci] for d in range(C)], axis=0)   # (d, c, K, K)
    sel = jnp.transpose(sel, (2, 3, 0, 1))                             # (K, K, d, c)
    sel = sel.reshape(K * K, C, C)                                     # (tap, d, c)
    sel = jnp.repeat(sel, N, axis=2)                                   # rows r = c*N + n
    return sel.reshape(K * K * C, N * C, 1).astype(jnp.float32)


def resblock_pallas(img, w1, b1, w2, b2, pad):
    """img: (N, C, H, W); w*: (C_out, C_in, K, K) (PyTorch OIHW); b*: (C,)."""
    N, C, H, W = img.shape
    K = w1.shape[-1]
    assert 2 * pad == K - 1, "ResBlock kernel assumes 'same' convolution"
    HW = H * W
    R = N * C

    # Channel-major, batch-minor sublane packing: row r = c*N + n.
    x2 = jnp.transpose(img, (1, 0, 2, 3)).reshape(R, HW)
    w1p = _prep_weight(w1, N, C, K)
    w2p = _prep_weight(w2, N, C, K)
    b1c = jnp.repeat(b1.astype(jnp.float32), N).reshape(R, 1)
    b2c = jnp.repeat(b2.astype(jnp.float32), N).reshape(R, 1)

    kernel = functools.partial(_resblock_kernel, N=N, C=C, H=H, W=W, K=K, P=pad,
                               roll_np=_roll_is_np_convention())

    flops = 2 * (2 * N * C * C * K * K * HW) + 4 * N * C * HW
    bytes_accessed = 4 * (2 * R * HW + 2 * (K * K * C * R + R))

    out = pl.pallas_call(
        kernel,
        out_shape=jax.ShapeDtypeStruct((R, HW), img.dtype),
        grid=(1,),  # single step; per-step overhead ~ the whole compute here
        in_specs=[
            pl.BlockSpec((R, HW), lambda i: (0, 0)),
            pl.BlockSpec((K * K * C, R, 1), lambda i: (0, 0, 0)),
            pl.BlockSpec((R, 1), lambda i: (0, 0)),
            pl.BlockSpec((K * K * C, R, 1), lambda i: (0, 0, 0)),
            pl.BlockSpec((R, 1), lambda i: (0, 0)),
        ],
        out_specs=pl.BlockSpec((R, HW), lambda i: (0, 0)),
        compiler_params=pltpu.CompilerParams(
            dimension_semantics=("arbitrary",)),
        cost_estimate=pl.CostEstimate(
            flops=flops, transcendentals=0, bytes_accessed=bytes_accessed),
    )(x2, w1p, b1c, w2p, b2c)

    return jnp.transpose(out.reshape(C, N, H, W), (1, 0, 2, 3))


def resblock_ref(img, w1, b1, w2, b2, pad):
    """Pure-JAX reference matching the PyTorch module (OIHW weights)."""
    x = jnp.maximum(img, 0.0)
    dn = jax.lax.conv_dimension_numbers(x.shape, w1.shape, ("NCHW", "OIHW", "NCHW"))
    c1 = jax.lax.conv_general_dilated(x, w1, (1, 1), [(pad, pad), (pad, pad)],
                                      dimension_numbers=dn)
    h1 = jnp.maximum(c1 + b1[None, :, None, None], 0.0)
    c2 = jax.lax.conv_general_dilated(h1, w2, (1, 1), [(pad, pad), (pad, pad)],
                                      dimension_numbers=dn)
    return x + c2 + b2[None, :, None, None]


if __name__ == "__main__":
    N, C, H, W = 2, 4, 16, 16       # batch=2, channels=4, spatial=16
    K, P = 3, 1                      # ResBlock(channel=4, kernel=3, pad=1)

    key = jax.random.PRNGKey(0)
    k_img, k_w1, k_b1, k_w2, k_b2 = jax.random.split(key, 5)

    img = jax.random.normal(k_img, (N, C, H, W), jnp.float32)

    # Deterministic Conv2d-style init (uniform in +/- 1/sqrt(fan_in)), OIHW layout.
    fan_in = C * K * K
    bound = 1.0 / (fan_in ** 0.5)
    w1 = jax.random.uniform(k_w1, (C, C, K, K), jnp.float32, -bound, bound)
    b1 = jax.random.uniform(k_b1, (C,), jnp.float32, -bound, bound)
    w2 = jax.random.uniform(k_w2, (C, C, K, K), jnp.float32, -bound, bound)
    b2 = jax.random.uniform(k_b2, (C,), jnp.float32, -bound, bound)

    out = jax.block_until_ready(resblock_pallas(img, w1, b1, w2, b2, P))
    ref = resblock_ref(img, w1, b1, w2, b2, P)

    assert out.shape == (N, C, H, W)
    err = float(jnp.max(jnp.abs(out - ref)))
    assert jnp.allclose(out, ref, atol=1e-4, rtol=1e-4), err
    print("KERNEL_OK")
</pallas_src>

<mosaic_0001>
module attributes {stable_mosaic.version = 11 : i64} {
  func.func @probe(%arg0: i32, %arg1: memref<8x128xi32, #tpu.memory_space<vmem>>, %arg2: memref<8x128xi32, #tpu.memory_space<vmem>>) attributes {dimension_semantics = [#tpu.dimension_semantics<arbitrary>], iteration_bounds = array<i64: 1>, scalar_prefetch = 0 : i64, scratch_operands = 0 : i64, tpu.core_type = #tpu.core_type<tc>, window_params = [{pipeline_mode = #tpu.pipeline_mode<synchronous>, transform_indices = @transform_0, window_bounds = array<i64: 8, 128>}, {pipeline_mode = #tpu.pipeline_mode<synchronous>, transform_indices = @transform_1, window_bounds = array<i64: 8, 128>}]} {
    %c0 = arith.constant 0 : index
    %c0_0 = arith.constant 0 : index
    %0 = vector.load %arg1[%c0, %c0_0] : memref<8x128xi32, #tpu.memory_space<vmem>>, vector<8x128xi32>
    %c1_i32 = arith.constant 1 : i32
    %1 = tpu.dynamic_rotate %0 by %c1_i32 dim 1 : vector<8x128xi32>, i32 -> vector<8x128xi32>
    %c0_1 = arith.constant 0 : index
    %c0_2 = arith.constant 0 : index
    %2 = vector.load %arg2[%c0_1, %c0_2] : memref<8x128xi32, #tpu.memory_space<vmem>>, vector<8x128xi32>
    tpu.vector_store %arg2[%c0_1, %c0_2], %1 {strides = array<i32>} : memref<8x128xi32, #tpu.memory_space<vmem>>, vector<8x128xi32>,
    return
  }
  func.func @transform_0(%arg0: i32) -> (i32, i32) {
    %c0_i32 = arith.constant 0 : i32
    %c0_i32_0 = arith.constant 0 : i32
    %c0_i32_1 = arith.constant 0 : i32
    return %c0_i32, %c0_i32_0 : i32, i32
  }
  func.func @transform_1(%arg0: i32) -> (i32, i32) {
    %c0_i32 = arith.constant 0 : i32
    %c0_i32_0 = arith.constant 0 : i32
    %c0_i32_1 = arith.constant 0 : i32
    return %c0_i32, %c0_i32_0 : i32, i32
  }
}

</mosaic_0001>

<llo_original>
// kernel: tpu_custom_call.1
$region0: #{tpu_custom_call.1}
  #allocation0 [shape = 'u32[]', space=smem, size = 0x4, offset = 0x4, fixed_abs, tag = 'smem constant byte address 0x4 - core index']
  #allocation1 [shape = 'u32[144,128]{1,0:T(1,128)}', space=vmem, size = 0x12000, scoped, tag = 'internal scratch']
  %s0 = inlined_call_operand.hbm [shape: s32[8,128], index: 0, kind: input, shape index: {}]
  %s1 = inlined_call_operand.hbm [shape: s32[8,128], index: 1, kind: output, shape index: {}]
  %s2 = sld [smem:[#allocation0]]
  $region18: #{tpu_custom_call.1} parent=0
    _
  %s4 = ssub.s32 1, %s2
  %s5 = scalar_select 0, %s4, %s2
  $region1: #{tpu_custom_call.1} parent=0
    #allocation2 [shape = 'u8[4096]{0}', space=vmem, size = 0x1000, scoped, tag = 'input window, operand 0, single buffered']
    #allocation3 [shape = 's32[1]{0}', space=sflag, size = 0x4, scoped, tag = 'scoped memory for tpu_custom_call.1']
    #allocation4 [shape = 's32[1]{0}', space=sflag, size = 0x4, scoped, tag = 'scoped memory for tpu_custom_call.1']
    #allocation5 [shape = 'u8[4096]{0}', space=vmem, size = 0x1000, scoped, tag = 'output window, operand 0, single buffered']
    %6 = vsyncpa [#allocation3], 0
    %7 = vsyncpa [#allocation4], 0
    // Predicated region
    $region2: #{tpu_custom_call.1} parent=1 // pred_check
      _
    $region3: #{tpu_custom_call.1} parent=1 // pred_check_branch
      %9 = sbr.rel (0) target = $region5
    $region4: #{tpu_custom_call.1} parent=1 // pred_region
      %s11 = ssub.s32 128, 128
      %12 = vsyncadd [#allocation3], %s11
      %s14 = sshll.u32 [#allocation2], 4
      %s15 = int_to_ptr.vmem [resolvable:$true] %s14
      %17 = dma.hbm_to_vmem [thread:$0]  %s0, 128, %s15, [#allocation3]
    $region5: #{tpu_custom_call.1} parent=1 // pred_fallthru
      _
    // Predicated region
    $region6: #{tpu_custom_call.1} parent=1 // pred_check
      _
    $region7: #{tpu_custom_call.1} parent=1 // pred_check_branch
      %19 = sbr.rel (0) target = $region9
    $region8: #{tpu_custom_call.1} parent=1 // pred_region
      %20 = dma.done [#allocation3], 128
    $region9: #{tpu_custom_call.1} parent=1 // pred_fallthru
      _
    %v21 = vld [vmem:[#allocation2] sm:$0xff]
    %22 = vrot.lane.b32.xlu0 %v21, 1
    %v23 = vpop.permute.xlu0 %22
    %24 = vst [vmem:[#allocation5] sm:$0xff] %v23
    // Predicated region
    $region10: #{tpu_custom_call.1} parent=1 // pred_check
      _
    $region11: #{tpu_custom_call.1} parent=1 // pred_check_branch
      %26 = sbr.rel (0) target = $region13
    $region12: #{tpu_custom_call.1} parent=1 // pred_region
      %s28 = ssub.s32 128, 128
      %29 = vsyncadd [#allocation4], %s28
      %s31 = sshll.u32 [#allocation5], 4
      %s32 = int_to_ptr.vmem [resolvable:$true] %s31
      %34 = dma.vmem_to_hbm [thread:$0]  %s32, 128, %s1, [#allocation4]
    $region13: #{tpu_custom_call.1} parent=1 // pred_fallthru
      _
    // Predicated region
    $region14: #{tpu_custom_call.1} parent=1 // pred_check
      _
    $region15: #{tpu_custom_call.1} parent=1 // pred_check_branch
      %36 = sbr.rel (0) target = $region17
    $region16: #{tpu_custom_call.1} parent=1 // pred_region
      %37 = dma.done [#allocation4], 128
    $region17: #{tpu_custom_call.1} parent=1 // pred_fallthru
      _
    %38 = vsyncpa [#allocation3], 1
    %39 = vsyncpa [#allocation4], 1

</llo_original>
